<compile_context>
chip_gen: v6e
topology: v6e:2x2x1
jax: 0.10.0
libtpu: 0.0.40
codegen_flags: <defaults>
</compile_context>

<pallas_src>
import functools

import jax
import jax.numpy as jnp
from jax.experimental import pallas as pl
from jax.experimental.pallas import tpu as pltpu

_LANE = 128                       # lane width: pad feature dims to this
_TILE = 256                       # node-axis tile (rows and reduction columns)
_VMEM_LIMIT = 48 * 1024 * 1024    # scoped VMEM request; fits v7x 64 MiB physical

# Set to jnp.bfloat16 on v5e (and optionally v6e/v7x) for 2-4x MXU throughput;
# accumulation stays f32 via preferred_element_type.  Default keeps exact f32
# numerics vs. the PyTorch reference.
MXU_INPUT_DTYPE = jnp.float32


def _round_up(x, m):
    return (x + m - 1) // m * m


def _pad2(a, rows, cols):
    r, c = a.shape
    if r == rows and c == cols:
        return a
    return jnp.pad(a, ((0, rows - r), (0, cols - c)))


# ---------------------------------------------------------------------------
# Linear layer kernel:  out = activation(x @ W + b), row-tiled ("parallel")
# ---------------------------------------------------------------------------
def _linear_kernel(x_ref, w_ref, b_ref, o_ref, *, activation, valid_cols):
    out = jnp.dot(x_ref[...].astype(MXU_INPUT_DTYPE),
                  w_ref[...].astype(MXU_INPUT_DTYPE),
                  preferred_element_type=jnp.float32)
    out = out + b_ref[...]
    if activation == "relu":
        out = jnp.maximum(out, 0.0)
    elif activation == "log_softmax":
        # mask zero-padded class columns so they don't contribute to the lse
        col = jax.lax.broadcasted_iota(jnp.int32, out.shape, 1)
        out = jnp.where(col < valid_cols, out, -jnp.inf)
        m = jnp.max(out, axis=-1, keepdims=True)
        s = out - m
        lse = jnp.log(jnp.sum(jnp.exp(s), axis=-1, keepdims=True))
        out = s - lse
    o_ref[...] = out.astype(o_ref.dtype)


def linear(x, w, b, activation="none", valid_cols=None, tm=_TILE):
    n, kdim = x.shape
    dout = w.shape[1]
    kernel = functools.partial(_linear_kernel, activation=activation,
                               valid_cols=valid_cols)
    return pl.pallas_call(
        kernel,
        out_shape=jax.ShapeDtypeStruct((n, dout), jnp.float32),
        grid=(n // tm,),
        in_specs=[
            pl.BlockSpec((tm, kdim), lambda i: (i, 0)),
            pl.BlockSpec((kdim, dout), lambda i: (0, 0)),
            pl.BlockSpec((1, dout), lambda i: (0, 0)),
        ],
        out_specs=pl.BlockSpec((tm, dout), lambda i: (i, 0)),
        compiler_params=pltpu.CompilerParams(
            dimension_semantics=("parallel",),
            vmem_limit_bytes=_VMEM_LIMIT),
    )(x, w, b)


# ---------------------------------------------------------------------------
# Loop-invariant masked adjacency:  A = adj * (y @ y.T),  rinv = 1/max(L1,eps)
# grid = (row tiles "parallel", col tiles "arbitrary" L1-reduction)
# ---------------------------------------------------------------------------
def _build_adj_kernel(adj_ref, yr_ref, yc_ref, a_ref, rinv_ref, l1_ref):
    k = pl.program_id(1)

    @pl.when(k == 0)
    def _():
        l1_ref[...] = jnp.zeros_like(l1_ref)

    # mask tile = y[rows i] @ y[rows k].T — transpose via contraction dims
    mask = jax.lax.dot_general(
        yr_ref[...].astype(MXU_INPUT_DTYPE),
        yc_ref[...].astype(MXU_INPUT_DTYPE),
        dimension_numbers=(((1,), (1,)), ((), ())),
        preferred_element_type=jnp.float32)
    a = adj_ref[...] * mask                # adj, mask >= 0 -> no abs needed
    a_ref[...] = a
    l1_ref[...] += jnp.sum(a, axis=-1, keepdims=True)

    @pl.when(k == pl.num_programs(1) - 1)
    def _():
        rinv_ref[...] = pl.reciprocal(jnp.maximum(l1_ref[...], 1e-12),
                                      approx=True)


def build_masked_adj(adj, y_hat, tm=_TILE, tk=_TILE):
    n = adj.shape[0]
    c = y_hat.shape[1]
    return pl.pallas_call(
        _build_adj_kernel,
        out_shape=(jax.ShapeDtypeStruct((n, n), jnp.float32),
                   jax.ShapeDtypeStruct((n, 1), jnp.float32)),
        grid_spec=pltpu.PrefetchScalarGridSpec(
            num_scalar_prefetch=0,
            grid=(n // tm, n // tk),
            in_specs=[
                pl.BlockSpec((tm, tk), lambda i, k: (i, k)),
                pl.BlockSpec((tm, c), lambda i, k: (i, 0)),
                pl.BlockSpec((tk, c), lambda i, k: (k, 0)),
            ],
            out_specs=[
                pl.BlockSpec((tm, tk), lambda i, k: (i, k)),
                pl.BlockSpec((tm, 1), lambda i, k: (i, 0)),
            ],
            scratch_shapes=[pltpu.VMEM((tm, 1), jnp.float32)],
        ),
        compiler_params=pltpu.CompilerParams(
            dimension_semantics=("parallel", "arbitrary"),
            vmem_limit_bytes=_VMEM_LIMIT),
    )(adj, y_hat, y_hat)


# ---------------------------------------------------------------------------
# One graph-conv layer:  out = (1-al) * (A @ h) * rinv + al * h0  (+ opt. L2)
# A reduction over column tiles with a VMEM accumulator, epilogue in pl.when.
# ---------------------------------------------------------------------------
def _conv_kernel(a_ref, h_ref, rinv_ref, h0_ref, o_ref, acc_ref, *, al, norm):
    k = pl.program_id(1)

    @pl.when(k == 0)
    def _():
        acc_ref[...] = jnp.zeros_like(acc_ref)

    acc_ref[...] += jnp.dot(a_ref[...].astype(MXU_INPUT_DTYPE),
                            h_ref[...].astype(MXU_INPUT_DTYPE),
                            preferred_element_type=jnp.float32)

    @pl.when(k == pl.num_programs(1) - 1)
    def _():
        # deferred row-L1 normalization:  (A @ h) / max(row_L1(A), 1e-12)
        support = acc_ref[...] * rinv_ref[...]
        out = (1.0 - al) * support + al * h0_ref[...]
        if norm:
            # F.normalize(p='fro', dim=1): per-row L2, eps = 1e-12
            inv_l2 = jax.lax.rsqrt(
                jnp.maximum(jnp.sum(out * out, axis=-1, keepdims=True), 1e-24))
            out = out * inv_l2
        o_ref[...] = out.astype(o_ref.dtype)


def conv_step(a_masked, h, rinv, h0, al, norm, tm=_TILE, tk=_TILE):
    n, hid = h.shape
    kernel = functools.partial(_conv_kernel, al=float(al), norm=bool(norm))
    return pl.pallas_call(
        kernel,
        out_shape=jax.ShapeDtypeStruct((n, hid), jnp.float32),
        grid_spec=pltpu.PrefetchScalarGridSpec(
            num_scalar_prefetch=0,
            grid=(n // tm, n // tk),
            in_specs=[
                pl.BlockSpec((tm, tk), lambda i, k: (i, k)),
                pl.BlockSpec((tk, hid), lambda i, k: (k, 0)),
                pl.BlockSpec((tm, 1), lambda i, k: (i, 0)),
                pl.BlockSpec((tm, hid), lambda i, k: (i, 0)),
            ],
            out_specs=pl.BlockSpec((tm, hid), lambda i, k: (i, 0)),
            scratch_shapes=[pltpu.VMEM((tm, hid), jnp.float32)],
        ),
        compiler_params=pltpu.CompilerParams(
            dimension_semantics=("parallel", "arbitrary"),
            vmem_limit_bytes=_VMEM_LIMIT),
    )(a_masked, h, rinv, h0)


# ---------------------------------------------------------------------------
# LEGNN forward (glue in plain JAX, hot paths in Pallas)
# ---------------------------------------------------------------------------
def legnn_forward(params, x, adj_dense, y_label, idx_train, *, nlayers, al, norm):
    w0, b0, w1, b1, w2, b2 = params
    n, nfeat = x.shape
    nhidden = w0.shape[1]
    nclass = w1.shape[1]

    # pad node axis to the tile and feature axes to lane width (exact padding)
    np_ = _round_up(max(n, _TILE), _TILE)
    fp = _round_up(nfeat, _LANE)
    hp = _round_up(nhidden, _LANE)
    cp = _round_up(nclass, _LANE)

    x_p = _pad2(x, np_, fp)
    adj_p = _pad2(adj_dense, np_, np_)
    w0_p, b0_p = _pad2(w0, fp, hp), _pad2(b0, 1, hp)
    w1_p, b1_p = _pad2(w1, hp, cp), _pad2(b1, 1, cp)
    w2_p, b2_p = _pad2(w2, hp, cp), _pad2(b2, 1, cp)
    y_label_p = _pad2(y_label, n, cp)

    # fcs[0] + ReLU (dropout is identity in eval mode)
    h_p = linear(x_p, w0_p, b0_p, activation="relu")
    h0_p = h_p

    # fcs[1] -> Pseudo; in-place train-index update happens BEFORE the softmax
    pseudo_p = linear(h_p, w1_p, b1_p, activation="none")
    pseudo_p = pseudo_p.at[idx_train].add(0.1 * y_label_p[idx_train])
    pseudo = pseudo_p[:n, :nclass]

    # y_hat = softmax(Pseudo, dim=1) over the valid class columns (cheap glue)
    col_valid = (jnp.arange(cp) < nclass)[None, :]
    y_hat_p = jax.nn.softmax(jnp.where(col_valid, pseudo_p, -jnp.inf), axis=1)

    # loop-invariant masked adjacency + row-L1 reciprocal, computed exactly once
    a_masked, rinv = build_masked_adj(adj_p, y_hat_p)

    # TODO(synk): for graphs where a_masked fits VMEM the nlayers loop could be
    # fused into a single pallas_call with the h ping-pong kept on-chip.
    for _ in range(nlayers):
        h_p = conv_step(a_masked, h_p, rinv, h0_p, al, norm)

    # fcs[-1] + stable log_softmax fused in-kernel (padded cols masked)
    out_p = linear(h_p, w2_p, b2_p, activation="log_softmax", valid_cols=nclass)
    return out_p[:n, :nclass], pseudo


# ---------------------------------------------------------------------------
# Deterministic parameter / input construction and smoke test
# ---------------------------------------------------------------------------
def init_params(key, nfeat, nhidden, nclass):
    ks = jax.random.split(key, 6)
    scale = lambda fan_in: 1.0 / jnp.sqrt(jnp.float32(fan_in))
    # Linear weights stored as [in, out]; biases as [1, out].
    w0 = jax.random.normal(ks[0], (nfeat, nhidden), jnp.float32) * scale(nfeat)
    b0 = jax.random.normal(ks[1], (1, nhidden), jnp.float32) * 0.01
    w1 = jax.random.normal(ks[2], (nhidden, nclass), jnp.float32) * scale(nhidden)
    b1 = jax.random.normal(ks[3], (1, nclass), jnp.float32) * 0.01
    w2 = jax.random.normal(ks[4], (nhidden, nclass), jnp.float32) * scale(nhidden)
    b2 = jax.random.normal(ks[5], (1, nclass), jnp.float32) * 0.01
    return (w0, b0, w1, b1, w2, b2)


if __name__ == "__main__":
    key = jax.random.PRNGKey(0)
    k_x, k_adj, k_lbl, k_par = jax.random.split(key, 4)

    # small shapes consistent with the module
    N, NFEAT, NHIDDEN, NCLASS, NLAYERS = 16, 32, 32, 8, 2
    AL = 0.1
    NORM = False  # corresponds to norm != 'True'

    x = jax.random.normal(k_x, (N, NFEAT), jnp.float32)

    # dense symmetric adjacency with self loops (stand-in for A.to_dense())
    a_rand = jax.random.uniform(k_adj, (N, N), jnp.float32)
    adj_dense = ((a_rand + a_rand.T) > 1.2).astype(jnp.float32) + jnp.eye(
        N, dtype=jnp.float32)

    # one-hot labels and training indices
    labels = jax.random.randint(k_lbl, (N,), 0, NCLASS)
    y_label = jax.nn.one_hot(labels, NCLASS, dtype=jnp.float32)
    idx_train = jnp.arange(4, dtype=jnp.int32)

    params = init_params(k_par, NFEAT, NHIDDEN, NCLASS)

    log_probs, pseudo = legnn_forward(
        params, x, adj_dense, y_label, idx_train,
        nlayers=NLAYERS, al=AL, norm=NORM,
    )
    jax.block_until_ready((log_probs, pseudo))

    assert log_probs.shape == (N, NCLASS)
    assert pseudo.shape == (N, NCLASS)
    assert bool(jnp.all(jnp.isfinite(log_probs)))
    assert bool(jnp.all(jnp.isfinite(pseudo)))
    print("KERNEL_OK")
</pallas_src>

<mosaic_0001>
module attributes {stable_mosaic.version = 11 : i64} {
  func.func @_linear_kernel(%arg0: i32, %arg1: memref<256x128xf32, #tpu.memory_space<vmem>>, %arg2: memref<128x128xf32, #tpu.memory_space<vmem>>, %arg3: memref<1x128xf32, #tpu.memory_space<vmem>>, %arg4: memref<256x128xf32, #tpu.memory_space<vmem>>) attributes {dimension_semantics = [#tpu.dimension_semantics<parallel>], iteration_bounds = array<i64: 1>, scalar_prefetch = 0 : i64, scratch_operands = 0 : i64, tpu.core_type = #tpu.core_type<tc>, window_params = [{transform_indices = @transform_0, window_bounds = array<i64: 256, 128>}, {pipeline_mode = #tpu.pipeline_mode<synchronous>, transform_indices = @transform_1, window_bounds = array<i64: 128, 128>}, {pipeline_mode = #tpu.pipeline_mode<synchronous>, transform_indices = @transform_2, window_bounds = array<i64: 1, 128>}, {transform_indices = @transform_3, window_bounds = array<i64: 256, 128>}]} {
    %c0 = arith.constant 0 : index
    %c0_0 = arith.constant 0 : index
    %0 = vector.load %arg1[%c0, %c0_0] : memref<256x128xf32, #tpu.memory_space<vmem>>, vector<256x128xf32>
    %c0_1 = arith.constant 0 : index
    %c0_2 = arith.constant 0 : index
    %1 = vector.load %arg2[%c0_1, %c0_2] : memref<128x128xf32, #tpu.memory_space<vmem>>, vector<128x128xf32>
    %cst = arith.constant dense<0.000000e+00> : vector<256x128xf32>
    %2 = tpu.matmul %0, %1, %cst {dimension_numbers = #tpu.dot_dimension_numbers<[1], [0], [0], [1], [0, 0, 1, 1], [], []>} : vector<256x128xf32>, vector<128x128xf32>, vector<256x128xf32> -> vector<256x128xf32>
    %c0_3 = arith.constant 0 : index
    %c0_4 = arith.constant 0 : index
    %3 = vector.load %arg3[%c0_3, %c0_4] : memref<1x128xf32, #tpu.memory_space<vmem>>, vector<1x128xf32>
    %4 = vector.broadcast %3 : vector<1x128xf32> to vector<256x128xf32>
    %5 = arith.addf %2, %4 : vector<256x128xf32>
    %cst_5 = arith.constant 0.000000e+00 : f32
    %6 = vector.broadcast %cst_5 : f32 to vector<256x128xf32>
    %7 = arith.maximumf %5, %6 : vector<256x128xf32>
    %c0_6 = arith.constant 0 : index
    %c0_7 = arith.constant 0 : index
    %8 = vector.load %arg4[%c0_6, %c0_7] : memref<256x128xf32, #tpu.memory_space<vmem>>, vector<256x128xf32>
    tpu.vector_store %arg4[%c0_6, %c0_7], %7 {strides = array<i32>} : memref<256x128xf32, #tpu.memory_space<vmem>>, vector<256x128xf32>,
    return
  }
  func.func @transform_0(%arg0: i32) -> (i32, i32) {
    %c0_i32 = arith.constant 0 : i32
    %c0_i32_0 = arith.constant 0 : i32
    return %arg0, %c0_i32 : i32, i32
  }
  func.func @transform_1(%arg0: i32) -> (i32, i32) {
    %c0_i32 = arith.constant 0 : i32
    %c0_i32_0 = arith.constant 0 : i32
    %c0_i32_1 = arith.constant 0 : i32
    return %c0_i32, %c0_i32_0 : i32, i32
  }
  func.func @transform_2(%arg0: i32) -> (i32, i32) {
    %c0_i32 = arith.constant 0 : i32
    %c0_i32_0 = arith.constant 0 : i32
    %c0_i32_1 = arith.constant 0 : i32
    return %c0_i32, %c0_i32_0 : i32, i32
  }
  func.func @transform_3(%arg0: i32) -> (i32, i32) {
    %c0_i32 = arith.constant 0 : i32
    %c0_i32_0 = arith.constant 0 : i32
    return %arg0, %c0_i32 : i32, i32
  }
}

</mosaic_0001>

<llo_original>
// kernel: tpu_custom_call.1
$region0: #{tpu_custom_call.1}
  #allocation0 [shape = 'u32[]', space=smem, size = 0x4, offset = 0x4, fixed_abs, tag = 'smem constant byte address 0x4 - core index']
  #allocation1 [shape = 'u32[144,128]{1,0:T(1,128)}', space=vmem, size = 0x12000, scoped, tag = 'internal scratch']
  %s0 = inlined_call_operand.hbm [shape: f32[256,128], index: 0, kind: input, shape index: {}]
  %s1 = inlined_call_operand.hbm [shape: f32[128,128], index: 1, kind: input, shape index: {}]
  %s2 = inlined_call_operand.vmem [shape: f32[1,128], index: 2, kind: input, shape index: {}]
  %s3 = inlined_call_operand.hbm [shape: f32[256,128], index: 3, kind: output, shape index: {}]
  %s4 = sld [smem:[#allocation0]]
  $region30: #{tpu_custom_call.1} parent=0
    _
  %s6 = ssub.s32 1, %s4
  %s7 = scalar_select 0, %s6, %s4
  $region1: #{tpu_custom_call.1} parent=0
    #allocation2 [shape = 'u8[131072]{0}', space=vmem, size = 0x20000, scoped, tag = 'input window, operand 0, single buffered']
    #allocation3 [shape = 's32[1]{0}', space=sflag, size = 0x4, scoped, tag = 'scoped memory for tpu_custom_call.1']
    #allocation4 [shape = 's32[1]{0}', space=sflag, size = 0x4, scoped, tag = 'scoped memory for tpu_custom_call.1']
    #allocation5 [shape = 'u8[65536]{0}', space=vmem, size = 0x10000, scoped, tag = 'input window, operand 1, single buffered']
    #allocation6 [shape = 's32[1]{0}', space=sflag, size = 0x4, scoped, tag = 'scoped memory for tpu_custom_call.1']
    #allocation7 [shape = 'u8[131072]{0}', space=vmem, size = 0x20000, scoped, tag = 'output window, operand 0, single buffered']
    %8 = vsyncpa [#allocation3], 0
    %9 = vsyncpa [#allocation6], 0
    %10 = vsyncpa [#allocation4], 0
    // Predicated region
    $region2: #{tpu_custom_call.1} parent=1 // pred_check
      _
    $region3: #{tpu_custom_call.1} parent=1 // pred_check_branch
      %12 = sbr.rel (0) target = $region5
    $region4: #{tpu_custom_call.1} parent=1 // pred_region
      %s14 = ssub.s32 4096, 4096
      %15 = vsyncadd [#allocation3], %s14
      %s16 = sshll.u32 [#allocation2], 4
      %s17 = int_to_ptr.vmem [resolvable:$true] %s16
      %22 = dma.hbm_to_vmem [thread:$0]  %s0, 4096, %s17, [#allocation3], 128, 128, 8
    $region5: #{tpu_custom_call.1} parent=1 // pred_fallthru
      _
    // Predicated region
    $region6: #{tpu_custom_call.1} parent=1 // pred_check
      _
    $region7: #{tpu_custom_call.1} parent=1 // pred_check_branch
      %24 = sbr.rel (0) target = $region9
    $region8: #{tpu_custom_call.1} parent=1 // pred_region
      %s26 = ssub.s32 2048, 2048
      %27 = vsyncadd [#allocation6], %s26
      %s28 = sshll.u32 [#allocation5], 4
      %s29 = int_to_ptr.vmem [resolvable:$true] %s28
      %34 = dma.hbm_to_vmem [thread:$0]  %s1, 2048, %s29, [#allocation6], 128, 128, 8
    $region9: #{tpu_custom_call.1} parent=1 // pred_fallthru
      _
    // Predicated region
    $region10: #{tpu_custom_call.1} parent=1 // pred_check
      _
    $region11: #{tpu_custom_call.1} parent=1 // pred_check_branch
      %36 = sbr.rel (0) target = $region13
    $region12: #{tpu_custom_call.1} parent=1 // pred_region
      _
    $region13: #{tpu_custom_call.1} parent=1 // pred_fallthru
      _
    // Predicated region
    $region14: #{tpu_custom_call.1} parent=1 // pred_check
      _
    $region15: #{tpu_custom_call.1} parent=1 // pred_check_branch
      %38 = sbr.rel (0) target = $region17
    $region16: #{tpu_custom_call.1} parent=1 // pred_region
      %39 = dma.done [#allocation3], 4096
    $region17: #{tpu_custom_call.1} parent=1 // pred_fallthru
      _
    // Predicated region
    $region18: #{tpu_custom_call.1} parent=1 // pred_check
      _
    $region19: #{tpu_custom_call.1} parent=1 // pred_check_branch
      %41 = sbr.rel (0) target = $region21
    $region20: #{tpu_custom_call.1} parent=1 // pred_region
      %42 = dma.done [#allocation6], 2048
    $region21: #{tpu_custom_call.1} parent=1 // pred_fallthru
      _
    %v43 = vld [vmem:[#allocation2] sm:$0xff]
    %v44 = vld [vmem:[#allocation2 + $0x8] sm:$0xff]
    %v45 = vld [vmem:[#allocation2 + $0x10] sm:$0xff]
    %v46 = vld [vmem:[#allocation2 + $0x18] sm:$0xff]
    %v47 = vld [vmem:[#allocation2 + $0x20] sm:$0xff]
    %v48 = vld [vmem:[#allocation2 + $0x28] sm:$0xff]
    %v49 = vld [vmem:[#allocation2 + $0x30] sm:$0xff]
    %v50 = vld [vmem:[#allocation2 + $0x38] sm:$0xff]
    %v51 = vld [vmem:[#allocation2 + $0x40] sm:$0xff]
    %v52 = vld [vmem:[#allocation2 + $0x48] sm:$0xff]
    %v53 = vld [vmem:[#allocation2 + $0x50] sm:$0xff]
    %v54 = vld [vmem:[#allocation2 + $0x58] sm:$0xff]
    %v55 = vld [vmem:[#allocation2 + $0x60] sm:$0xff]
    %v56 = vld [vmem:[#allocation2 + $0x68] sm:$0xff]
    %v57 = vld [vmem:[#allocation2 + $0x70] sm:$0xff]
    %v58 = vld [vmem:[#allocation2 + $0x78] sm:$0xff]
    %v59 = vld [vmem:[#allocation2 + $0x80] sm:$0xff]
    %v60 = vld [vmem:[#allocation2 + $0x88] sm:$0xff]
    %v61 = vld [vmem:[#allocation2 + $0x90] sm:$0xff]
    %v62 = vld [vmem:[#allocation2 + $0x98] sm:$0xff]
    %v63 = vld [vmem:[#allocation2 + $0xa0] sm:$0xff]
    %v64 = vld [vmem:[#allocation2 + $0xa8] sm:$0xff]
    %v65 = vld [vmem:[#allocation2 + $0xb0] sm:$0xff]
    %v66 = vld [vmem:[#allocation2 + $0xb8] sm:$0xff]
    %v67 = vld [vmem:[#allocation2 + $0xc0] sm:$0xff]
    %v68 = vld [vmem:[#allocation2 + $0xc8] sm:$0xff]
    %v69 = vld [vmem:[#allocation2 + $0xd0] sm:$0xff]
    %v70 = vld [vmem:[#allocation2 + $0xd8] sm:$0xff]
    %v71 = vld [vmem:[#allocation2 + $0xe0] sm:$0xff]
    %v72 = vld [vmem:[#allocation2 + $0xe8] sm:$0xff]
    %v73 = vld [vmem:[#allocation2 + $0xf0] sm:$0xff]
    %v74 = vld [vmem:[#allocation2 + $0xf8] sm:$0xff]
    %v75 = vld [vmem:[#allocation5] sm:$0xff]
    %v76 = vld [vmem:[#allocation5 + $0x8] sm:$0xff]
    %v77 = vld [vmem:[#allocation5 + $0x10] sm:$0xff]
    %v78 = vld [vmem:[#allocation5 + $0x18] sm:$0xff]
    %v79 = vld [vmem:[#allocation5 + $0x20] sm:$0xff]
    %v80 = vld [vmem:[#allocation5 + $0x28] sm:$0xff]
    %v81 = vld [vmem:[#allocation5 + $0x30] sm:$0xff]
    %v82 = vld [vmem:[#allocation5 + $0x38] sm:$0xff]
    %v83 = vld [vmem:[#allocation5 + $0x40] sm:$0xff]
    %v84 = vld [vmem:[#allocation5 + $0x48] sm:$0xff]
    %v85 = vld [vmem:[#allocation5 + $0x50] sm:$0xff]
    %v86 = vld [vmem:[#allocation5 + $0x58] sm:$0xff]
    %v87 = vld [vmem:[#allocation5 + $0x60] sm:$0xff]
    %v88 = vld [vmem:[#allocation5 + $0x68] sm:$0xff]
    %v89 = vld [vmem:[#allocation5 + $0x70] sm:$0xff]
    %v90 = vld [vmem:[#allocation5 + $0x78] sm:$0xff]
    %v91 = vld [vmem:[%s2] sm:$0x1]
    %v93 = vlaneseq
    %v94 = vshrl.u32 %v93, 7
    %v95 = vsub.s32 0, %v94
    %v96 = vrot.slane %v91, %v95
    %98 = vmatprep.subr.mxu0 0.0
    %99 = vmatpush1.msra.mxu0 %v90
    %100 = vmatprep.subr.mxu0 0.0
    %101 = vmatpush1.msra.mxu0 %v89
    %102 = vmatprep.subr.mxu0 0.0
    %103 = vmatpush1.msra.mxu0 %v88
    %104 = vmatprep.subr.mxu0 0.0
    %105 = vmatpush1.msra.mxu0 %v87
    %106 = vmatprep.subr.mxu0 0.0
    %107 = vmatpush1.msra.mxu0 %v86
    %108 = vmatprep.subr.mxu0 0.0
    %109 = vmatpush1.msra.mxu0 %v85
    %110 = vmatprep.subr.mxu0 0.0
    %111 = vmatpush1.msra.mxu0 %v84
    %112 = vmatprep.subr.mxu0 0.0
    %113 = vmatpush1.msra.mxu0 %v83
    %114 = vmatprep.subr.mxu0 0.0
    %115 = vmatpush1.msra.mxu0 %v82
    %116 = vmatprep.subr.mxu0 0.0
    %117 = vmatpush1.msra.mxu0 %v81
    %118 = vmatprep.subr.mxu0 0.0
    %119 = vmatpush1.msra.mxu0 %v80
    %120 = vmatprep.subr.mxu0 0.0
    %121 = vmatpush1.msra.mxu0 %v79
    %122 = vmatprep.subr.mxu0 0.0
    %123 = vmatpush1.msra.mxu0 %v78
    %124 = vmatprep.subr.mxu0 0.0
    %125 = vmatpush1.msra.mxu0 %v77
    %126 = vmatprep.subr.mxu0 0.0
    %127 = vmatpush1.msra.mxu0 %v76
    %128 = vmatprep.subr.mxu0 0.0
    %129 = vmatpush1.msra.mxu0 %v75
    %130 = vmatprep.subr.mxu0 0.0
    %131 = vmatpush2.msra.mxu0 0.0
    %132 = vmatprep.subr.mxu0 0.0
    %133 = vmatpush2.msra.mxu0 0.0
    %134 = vmatprep.subr.mxu0 0.0
    %135 = vmatpush2.msra.mxu0 0.0
    %136 = vmatprep.subr.mxu0 0.0
    %137 = vmatpush2.msra.mxu0 0.0
    %138 = vmatprep.subr.mxu0 0.0
    %139 = vmatpush2.msra.mxu0 0.0
    %140 = vmatprep.subr.mxu0 0.0
    %141 = vmatpush2.msra.mxu0 0.0
    %142 = vmatprep.subr.mxu0 0.0
    %143 = vmatpush2.msra.mxu0 0.0
    %144 = vmatprep.subr.mxu0 0.0
    %145 = vmatpush2.msra.mxu0 0.0
    %146 = vmatprep.subr.mxu0 0.0
    %147 = vmatpush2.msra.mxu0 0.0
    %148 = vmatprep.subr.mxu0 0.0
    %149 = vmatpush2.msra.mxu0 0.0
    %150 = vmatprep.subr.mxu0 0.0
    %151 = vmatpush2.msra.mxu0 0.0
    %152 = vmatprep.subr.mxu0 0.0
    %153 = vmatpush2.msra.mxu0 0.0
    %154 = vmatprep.subr.mxu0 0.0
    %155 = vmatpush2.msra.mxu0 0.0
    %156 = vmatprep.subr.mxu0 0.0
    %157 = vmatpush2.msra.mxu0 0.0
    %158 = vmatprep.subr.mxu0 0.0
    %159 = vmatpush2.msra.mxu0 0.0
    %160 = vmatprep.subr.mxu0 0.0
    %161 = vmatpush2.msra.mxu0 0.0
    %162 = vmatprep.mubr.f32.mxu0 0.0
    %163 = vmatmul.mubr.f32.gmra.mxu0 %v43
    %v164 = vpop.f32.mrf.mxu0
    %v165 = vadd.f32 %v96, %v164
    %v166 = vpop.f32.mrf.mxu0
    %167 = vmatprep.mubr.f32.mxu0 0.0
    %168 = vmatmul.mubr.f32.gmra.mxu0 %v44
    %v169 = vpop.f32.mrf.mxu0
    %v170 = vadd.f32 %v96, %v169
    %v171 = vpop.f32.mrf.mxu0
    %172 = vmatprep.mubr.f32.mxu0 0.0
    %173 = vmatmul.mubr.f32.gmra.mxu0 %v45
    %v174 = vpop.f32.mrf.mxu0
    %v175 = vadd.f32 %v96, %v174
    %v176 = vpop.f32.mrf.mxu0
    %177 = vmatprep.mubr.f32.mxu0 0.0
    %178 = vmatmul.mubr.f32.gmra.mxu0 %v46
    %v179 = vpop.f32.mrf.mxu0
    %v180 = vadd.f32 %v96, %v179
    %v181 = vpop.f32.mrf.mxu0
    %182 = vmatprep.mubr.f32.mxu0 0.0
    %183 = vmatmul.mubr.f32.gmra.mxu0 %v47
    %v184 = vpop.f32.mrf.mxu0
    %v185 = vadd.f32 %v96, %v184
    %v186 = vpop.f32.mrf.mxu0
    %187 = vmatprep.mubr.f32.mxu0 0.0
    %188 = vmatmul.mubr.f32.gmra.mxu0 %v48
    %v189 = vpop.f32.mrf.mxu0
    %v190 = vadd.f32 %v96, %v189
    %v191 = vpop.f32.mrf.mxu0
    %192 = vmatprep.mubr.f32.mxu0 0.0
    %193 = vmatmul.mubr.f32.gmra.mxu0 %v49
    %v194 = vpop.f32.mrf.mxu0
    %v195 = vadd.f32 %v96, %v194
    %v196 = vpop.f32.mrf.mxu0
    %197 = vmatprep.mubr.f32.mxu0 0.0
    %198 = vmatmul.mubr.f32.gmra.mxu0 %v50
    %v199 = vpop.f32.mrf.mxu0
    %v200 = vadd.f32 %v96, %v199
    %v201 = vpop.f32.mrf.mxu0
    %202 = vmatprep.mubr.f32.mxu0 0.0
    %203 = vmatmul.mubr.f32.gmra.mxu0 %v51
    %v204 = vpop.f32.mrf.mxu0
    %v205 = vadd.f32 %v96, %v204
    %v206 = vpop.f32.mrf.mxu0
    %207 = vmatprep.mubr.f32.mxu0 0.0
    %208 = vmatmul.mubr.f32.gmra.mxu0 %v52
    %v209 = vpop.f32.mrf.mxu0
    %v210 = vadd.f32 %v96, %v209
    %v211 = vpop.f32.mrf.mxu0
    %212 = vmatprep.mubr.f32.mxu0 0.0
    %213 = vmatmul.mubr.f32.gmra.mxu0 %v53
    %v214 = vpop.f32.mrf.mxu0
    %v215 = vadd.f32 %v96, %v214
    %v216 = vpop.f32.mrf.mxu0
    %217 = vmatprep.mubr.f32.mxu0 0.0
    %218 = vmatmul.mubr.f32.gmra.mxu0 %v54
    %v219 = vpop.f32.mrf.mxu0
    %v220 = vadd.f32 %v96, %v219
    %v221 = vpop.f32.mrf.mxu0
    %222 = vmatprep.mubr.f32.mxu0 0.0
    %223 = vmatmul.mubr.f32.gmra.mxu0 %v55
    %v224 = vpop.f32.mrf.mxu0
    %v225 = vadd.f32 %v96, %v224
    %v226 = vpop.f32.mrf.mxu0
    %227 = vmatprep.mubr.f32.mxu0 0.0
    %228 = vmatmul.mubr.f32.gmra.mxu0 %v56
    %v229 = vpop.f32.mrf.mxu0
    %v230 = vadd.f32 %v96, %v229
    %v231 = vpop.f32.mrf.mxu0
    %232 = vmatprep.mubr.f32.mxu0 0.0
    %233 = vmatmul.mubr.f32.gmra.mxu0 %v57
    %v234 = vpop.f32.mrf.mxu0
    %v235 = vadd.f32 %v96, %v234
    %v236 = vpop.f32.mrf.mxu0
    %237 = vmatprep.mubr.f32.mxu0 0.0
    %238 = vmatmul.mubr.f32.gmra.mxu0 %v58
    %v239 = vpop.f32.mrf.mxu0
    %v240 = vadd.f32 %v96, %v239
    %v241 = vpop.f32.mrf.mxu0
    %242 = vmatprep.mubr.f32.mxu0 0.0
    %243 = vmatmul.mubr.f32.gmra.mxu0 %v59
    %v244 = vpop.f32.mrf.mxu0
    %v245 = vadd.f32 %v96, %v244
    %v246 = vpop.f32.mrf.mxu0
    %247 = vmatprep.mubr.f32.mxu0 0.0
    %248 = vmatmul.mubr.f32.gmra.mxu0 %v60
    %v249 = vpop.f32.mrf.mxu0
    %v250 = vadd.f32 %v96, %v249
    %v251 = vpop.f32.mrf.mxu0
    %252 = vmatprep.mubr.f32.mxu0 0.0
    %253 = vmatmul.mubr.f32.gmra.mxu0 %v61
    %v254 = vpop.f32.mrf.mxu0
    %v255 = vadd.f32 %v96, %v254
    %v256 = vpop.f32.mrf.mxu0
    %257 = vmatprep.mubr.f32.mxu0 0.0
    %258 = vmatmul.mubr.f32.gmra.mxu0 %v62
    %v259 = vpop.f32.mrf.mxu0
    %v260 = vadd.f32 %v96, %v259
    %v261 = vpop.f32.mrf.mxu0
    %262 = vmatprep.mubr.f32.mxu0 0.0
    %263 = vmatmul.mubr.f32.gmra.mxu0 %v63
    %v264 = vpop.f32.mrf.mxu0
    %v265 = vadd.f32 %v96, %v264
    %v266 = vpop.f32.mrf.mxu0
    %267 = vmatprep.mubr.f32.mxu0 0.0
    %268 = vmatmul.mubr.f32.gmra.mxu0 %v64
    %v269 = vpop.f32.mrf.mxu0
    %v270 = vadd.f32 %v96, %v269
    %v271 = vpop.f32.mrf.mxu0
    %272 = vmatprep.mubr.f32.mxu0 0.0
    %273 = vmatmul.mubr.f32.gmra.mxu0 %v65
    %v274 = vpop.f32.mrf.mxu0
    %v275 = vadd.f32 %v96, %v274
    %v276 = vpop.f32.mrf.mxu0
    %277 = vmatprep.mubr.f32.mxu0 0.0
    %278 = vmatmul.mubr.f32.gmra.mxu0 %v66
    %v279 = vpop.f32.mrf.mxu0
    %v280 = vadd.f32 %v96, %v279
    %v281 = vpop.f32.mrf.mxu0
    %282 = vmatprep.mubr.f32.mxu0 0.0
    %283 = vmatmul.mubr.f32.gmra.mxu0 %v67
    %v284 = vpop.f32.mrf.mxu0
    %v285 = vadd.f32 %v96, %v284
    %v286 = vpop.f32.mrf.mxu0
    %287 = vmatprep.mubr.f32.mxu0 0.0
    %288 = vmatmul.mubr.f32.gmra.mxu0 %v68
    %v289 = vpop.f32.mrf.mxu0
    %v290 = vadd.f32 %v96, %v289
    %v291 = vpop.f32.mrf.mxu0
    %292 = vmatprep.mubr.f32.mxu0 0.0
    %293 = vmatmul.mubr.f32.gmra.mxu0 %v69
    %v294 = vpop.f32.mrf.mxu0
    %v295 = vadd.f32 %v96, %v294
    %v296 = vpop.f32.mrf.mxu0
    %297 = vmatprep.mubr.f32.mxu0 0.0
    %298 = vmatmul.mubr.f32.gmra.mxu0 %v70
    %v299 = vpop.f32.mrf.mxu0
    %v300 = vadd.f32 %v96, %v299
    %v301 = vpop.f32.mrf.mxu0
    %302 = vmatprep.mubr.f32.mxu0 0.0
    %303 = vmatmul.mubr.f32.gmra.mxu0 %v71
    %v304 = vpop.f32.mrf.mxu0
    %v305 = vadd.f32 %v96, %v304
    %v306 = vpop.f32.mrf.mxu0
    %307 = vmatprep.mubr.f32.mxu0 0.0
    %308 = vmatmul.mubr.f32.gmra.mxu0 %v72
    %v309 = vpop.f32.mrf.mxu0
    %v310 = vadd.f32 %v96, %v309
    %v311 = vpop.f32.mrf.mxu0
    %312 = vmatprep.mubr.f32.mxu0 0.0
    %313 = vmatmul.mubr.f32.gmra.mxu0 %v73
    %v314 = vpop.f32.mrf.mxu0
    %v315 = vadd.f32 %v96, %v314
    %v316 = vpop.f32.mrf.mxu0
    %317 = vmatprep.mubr.f32.mxu0 0.0
    %318 = vmatmul.mubr.f32.gmra.mxu0 %v74
    %v319 = vpop.f32.mrf.mxu0
    %v320 = vadd.f32 %v96, %v319
    %v321 = vpop.f32.mrf.mxu0
    %322 = vdwg.mxu0
    %v323 = vmax.f32 %v165, 0.0
    %v324 = vmax.f32 %v170, 0.0
    %v325 = vmax.f32 %v175, 0.0
    %v326 = vmax.f32 %v180, 0.0
    %v327 = vmax.f32 %v185, 0.0
    %v328 = vmax.f32 %v190, 0.0
    %v329 = vmax.f32 %v195, 0.0
    %v330 = vmax.f32 %v200, 0.0
    %v331 = vmax.f32 %v205, 0.0
    %v332 = vmax.f32 %v210, 0.0
    %v333 = vmax.f32 %v215, 0.0
    %v334 = vmax.f32 %v220, 0.0
    %v335 = vmax.f32 %v225, 0.0
    %v336 = vmax.f32 %v230, 0.0
    %v337 = vmax.f32 %v235, 0.0
    %v338 = vmax.f32 %v240, 0.0
    %v339 = vmax.f32 %v245, 0.0
    %v340 = vmax.f32 %v250, 0.0
    %v341 = vmax.f32 %v255, 0.0
    %v342 = vmax.f32 %v260, 0.0
    %v343 = vmax.f32 %v265, 0.0
    %v344 = vmax.f32 %v270, 0.0
    %v345 = vmax.f32 %v275, 0.0
    %v346 = vmax.f32 %v280, 0.0
    %v347 = vmax.f32 %v285, 0.0
    %v348 = vmax.f32 %v290, 0.0
    %v349 = vmax.f32 %v295, 0.0
    %v350 = vmax.f32 %v300, 0.0
    %v351 = vmax.f32 %v305, 0.0
    %v352 = vmax.f32 %v310, 0.0
    %v353 = vmax.f32 %v315, 0.0
    %v354 = vmax.f32 %v320, 0.0
    %355 = vst [vmem:[#allocation7] sm:$0xff] %v323
    %356 = vst [vmem:[#allocation7 + $0x8] sm:$0xff] %v324
    %357 = vst [vmem:[#allocation7 + $0x10] sm:$0xff] %v325
    %358 = vst [vmem:[#allocation7 + $0x18] sm:$0xff] %v326
    %359 = vst [vmem:[#allocation7 + $0x20] sm:$0xff] %v327
    %360 = vst [vmem:[#allocation7 + $0x28] sm:$0xff] %v328
    %361 = vst [vmem:[#allocation7 + $0x30] sm:$0xff] %v329
    %362 = vst [vmem:[#allocation7 + $0x38] sm:$0xff] %v330
    %363 = vst [vmem:[#allocation7 + $0x40] sm:$0xff] %v331
    %364 = vst [vmem:[#allocation7 + $0x48] sm:$0xff] %v332
    %365 = vst [vmem:[#allocation7 + $0x50] sm:$0xff] %v333
    %366 = vst [vmem:[#allocation7 + $0x58] sm:$0xff] %v334
    %367 = vst [vmem:[#allocation7 + $0x60] sm:$0xff] %v335
    %368 = vst [vmem:[#allocation7 + $0x68] sm:$0xff] %v336
    %369 = vst [vmem:[#allocation7 + $0x70] sm:$0xff] %v337
    %370 = vst [vmem:[#allocation7 + $0x78] sm:$0xff] %v338
    %371 = vst [vmem:[#allocation7 + $0x80] sm:$0xff] %v339
    %372 = vst [vmem:[#allocation7 + $0x88] sm:$0xff] %v340
    %373 = vst [vmem:[#allocation7 + $0x90] sm:$0xff] %v341
    %374 = vst [vmem:[#allocation7 + $0x98] sm:$0xff] %v342
    %375 = vst [vmem:[#allocation7 + $0xa0] sm:$0xff] %v343
    %376 = vst [vmem:[#allocation7 + $0xa8] sm:$0xff] %v344
    %377 = vst [vmem:[#allocation7 + $0xb0] sm:$0xff] %v345
    %378 = vst [vmem:[#allocation7 + $0xb8] sm:$0xff] %v346
    %379 = vst [vmem:[#allocation7 + $0xc0] sm:$0xff] %v347
    %380 = vst [vmem:[#allocation7 + $0xc8] sm:$0xff] %v348
    %381 = vst [vmem:[#allocation7 + $0xd0] sm:$0xff] %v349
    %382 = vst [vmem:[#allocation7 + $0xd8] sm:$0xff] %v350
    %383 = vst [vmem:[#allocation7 + $0xe0] sm:$0xff] %v351
    %384 = vst [vmem:[#allocation7 + $0xe8] sm:$0xff] %v352
    %385 = vst [vmem:[#allocation7 + $0xf0] sm:$0xff] %v353
    %386 = vst [vmem:[#allocation7 + $0xf8] sm:$0xff] %v354
    // Predicated region
    $region22: #{tpu_custom_call.1} parent=1 // pred_check
      _
    $region23: #{tpu_custom_call.1} parent=1 // pred_check_branch
      %388 = sbr.rel (0) target = $region25
    $region24: #{tpu_custom_call.1} parent=1 // pred_region
      %s390 = ssub.s32 4096, 4096
      %391 = vsyncadd [#allocation4], %s390
      %s392 = sshll.u32 [#allocation7], 4
      %s393 = int_to_ptr.vmem [resolvable:$true] %s392
      %398 = dma.vmem_to_hbm [thread:$0]  %s393, 4096, %s3, [#allocation4], 128, 128, 8
    $region25: #{tpu_custom_call.1} parent=1 // pred_fallthru
      _
    // Predicated region
    $region26: #{tpu_custom_call.1} parent=1 // pred_check
      _
    $region27: #{tpu_custom_call.1} parent=1 // pred_check_branch
      %400 = sbr.rel (0) target = $region29
    $region28: #{tpu_custom_call.1} parent=1 // pred_region
      %401 = dma.done [#allocation4], 4096
    $region29: #{tpu_custom_call.1} parent=1 // pred_fallthru
      _
    %402 = vsyncpa [#allocation3], 1
    %403 = vsyncpa [#allocation6], 1
    %404 = vsyncpa [#allocation4], 1

</llo_original>
